<compile_context>
chip_gen: v6e
topology: v6e:2x2x1
jax: 0.10.0
libtpu: 0.0.40
codegen_flags: <defaults>
</compile_context>

<pallas_src>
import jax
import jax.numpy as jnp
from jax.experimental import pallas as pl
from jax.experimental.pallas import tpu as pltpu


# ----------------------------------------------------------------------------
# Fast path: single batch-blocked kernel.
# ----------------------------------------------------------------------------
def _ca_kernel(x_ref, w1t_ref, b1_ref, w2t_ref, b2_ref, o_ref):
    # x_ref/o_ref: (Nb, C, HW)   w1t_ref: (C, Cr)  b1_ref: (1, Cr)
    # w2t_ref: (Cr, C)           b2_ref: (1, C)    (params are f32)
    # Global average pool over the fused spatial (lane) axis, in f32.
    y = jnp.mean(x_ref[...].astype(jnp.float32), axis=-1)                  # (Nb, C)
    # Squeeze 1x1 conv + LeakyReLU(0.2) on the MXU (free vector-extended slot).
    h = jnp.dot(y, w1t_ref[...], preferred_element_type=jnp.float32) + b1_ref[...]
    h = jnp.where(h >= 0.0, h, 0.2 * h)                                    # (Nb, Cr)
    # Excite 1x1 conv + sigmoid.
    s = jnp.dot(h, w2t_ref[...], preferred_element_type=jnp.float32) + b2_ref[...]
    s = jax.nn.sigmoid(s)                                                  # (Nb, C)
    # Rescale: stream vld -> vmul -> vst over the block in the input dtype
    # (no block-sized f32 copy stays live).
    o_ref[...] = (x_ref[...] * s[:, :, None].astype(x_ref.dtype)).astype(o_ref.dtype)


# ----------------------------------------------------------------------------
# Fallback path: HW-tiled pool+MLP kernel, then HW-tiled rescale kernel.
# ----------------------------------------------------------------------------
def _make_pool_mlp_kernel(hw, thw):
    inv_hw = 1.0 / float(hw)
    ragged = (hw % thw) != 0

    def kernel(x_ref, w1t_ref, b1_ref, w2t_ref, b2_ref, s_ref, acc_ref):
        # x_ref: (Nb, C, thw)  s_ref: (Nb, C, 1)  acc_ref: (Nb, C) f32 scratch
        t = pl.program_id(1)

        @pl.when(t == 0)
        def _():
            acc_ref[...] = jnp.zeros_like(acc_ref)

        xblk = x_ref[...].astype(jnp.float32)
        if ragged:
            # Mask the out-of-range lanes of the overhanging last HW tile so
            # the partial sum is exact (masking is skipped entirely when HW is
            # a multiple of the tile -- keep the streaming pass lean).
            lane = jax.lax.broadcasted_iota(jnp.int32, xblk.shape, dimension=2)
            xblk = jnp.where(lane + t * thw < hw, xblk, 0.0)
        acc_ref[...] += jnp.sum(xblk, axis=-1)

        @pl.when(t == pl.num_programs(1) - 1)
        def _():
            y = acc_ref[...] * inv_hw                                       # (Nb, C)
            h = jnp.dot(y, w1t_ref[...], preferred_element_type=jnp.float32) + b1_ref[...]
            h = jnp.where(h >= 0.0, h, 0.2 * h)
            s = jnp.dot(h, w2t_ref[...], preferred_element_type=jnp.float32) + b2_ref[...]
            s_ref[...] = jax.nn.sigmoid(s)[:, :, None]                      # (Nb, C, 1)

    return kernel


def _rescale_kernel(x_ref, s_ref, o_ref):
    # x_ref/o_ref: (Nb, C, thw)   s_ref: (Nb, C, 1) f32
    o_ref[...] = (x_ref[...] * s_ref[...].astype(x_ref.dtype)).astype(o_ref.dtype)


# ----------------------------------------------------------------------------
# Wrapper
# ----------------------------------------------------------------------------
def _choose_nb(n, bytes_per_sample, target_bytes):
    """Batch-block size: ~target_bytes per block, but keep enough grid steps."""
    nb = max(1, target_bytes // max(1, bytes_per_sample))
    if n >= 8:
        nb = min(nb, n // 8)      # >= 8 steps (>= 4 per TensorCore on v7x)
    elif n >= 4:
        nb = min(nb, n // 4)      # >= 4 steps
    elif n >= 2:
        nb = min(nb, n // 2)      # at least one step per TensorCore
    return max(1, min(nb, n))


def ca_layer(x, w1, b1, w2, b2, *,
             block_target_bytes=4 << 20,
             hw_split_bytes=8 << 20,
             batch_block=None):
    """x: (N, C, H, W).  w1: (Cr, C), b1: (Cr,), w2: (C, Cr), b2: (C,)."""
    N, C, H, W = x.shape
    Cr = w1.shape[0]
    HW = H * W
    elt = jnp.dtype(x.dtype).itemsize

    x2 = x.reshape(N, C, HW)
    # Pre-transpose the 1x1-conv weights so the in-kernel MLP is two plain
    # row-major MXU matmuls with no in-kernel transpose.
    w1t = jnp.transpose(w1).astype(jnp.float32)     # (C, Cr)
    w2t = jnp.transpose(w2).astype(jnp.float32)     # (Cr, C)
    b1c = b1.reshape(1, Cr).astype(jnp.float32)
    b2c = b2.reshape(1, C).astype(jnp.float32)

    sample_bytes = C * HW * elt
    param_bytes = (2 * C * Cr + Cr + C) * 4

    Nb = batch_block if batch_block is not None else _choose_nb(N, sample_bytes, block_target_bytes)
    Nb = max(1, min(int(Nb), N))

    if sample_bytes <= hw_split_bytes:
        # ------------------------- fast path ---------------------------------
        grid = (pl.cdiv(N, Nb),)
        block_bytes = Nb * sample_bytes
        # Steady-state VMEM ~ 2x in-block + 2x out-block + params; explicit
        # limit keeps v5e's 16 MiB scoped default from breaking 4 MiB blocks
        # while staying under v7x's 64 MiB physical VMEM.
        vmem_limit = int(min(48 << 20, max(16 << 20, 4 * block_bytes + param_bytes + (4 << 20))))
        cost = pl.CostEstimate(
            flops=int(3 * N * C * HW + 4 * N * C * Cr),
            transcendentals=int(N * C),
            bytes_accessed=int(2 * N * C * HW * elt + param_bytes),
        )
        out = pl.pallas_call(
            _ca_kernel,
            out_shape=jax.ShapeDtypeStruct((N, C, HW), x.dtype),
            grid_spec=pltpu.PrefetchScalarGridSpec(
                num_scalar_prefetch=0,
                grid=grid,
                in_specs=[
                    pl.BlockSpec((Nb, C, HW), lambda b: (b, 0, 0)),
                    pl.BlockSpec((C, Cr), lambda b: (0, 0)),
                    pl.BlockSpec((1, Cr), lambda b: (0, 0)),
                    pl.BlockSpec((Cr, C), lambda b: (0, 0)),
                    pl.BlockSpec((1, C), lambda b: (0, 0)),
                ],
                out_specs=pl.BlockSpec((Nb, C, HW), lambda b: (b, 0, 0)),
            ),
            compiler_params=pltpu.CompilerParams(
                dimension_semantics=("parallel",),
                vmem_limit_bytes=vmem_limit,
            ),
            cost_estimate=cost,
        )(x2, w1t, b1c, w2t, b2c)
        return out.reshape(N, C, H, W)

    # --------------------------- fallback path -------------------------------
    # Huge single samples: tile the fused spatial axis (multiple of 128 lanes)
    # and split into (pool + MLP) and (rescale) kernels.
    lanes_target = max(128, block_target_bytes // max(1, Nb * C * elt))
    thw = min(HW, max(128, (lanes_target // 128) * 128))
    n_hw = pl.cdiv(HW, thw)
    tile_bytes = Nb * C * thw * elt
    vmem_limit = int(min(48 << 20, max(16 << 20, 4 * tile_bytes + param_bytes + (4 << 20))))

    s = pl.pallas_call(
        _make_pool_mlp_kernel(HW, thw),
        out_shape=jax.ShapeDtypeStruct((N, C, 1), jnp.float32),
        grid_spec=pltpu.PrefetchScalarGridSpec(
            num_scalar_prefetch=0,
            grid=(pl.cdiv(N, Nb), n_hw),
            in_specs=[
                pl.BlockSpec((Nb, C, thw), lambda i, t: (i, 0, t)),
                pl.BlockSpec((C, Cr), lambda i, t: (0, 0)),
                pl.BlockSpec((1, Cr), lambda i, t: (0, 0)),
                pl.BlockSpec((Cr, C), lambda i, t: (0, 0)),
                pl.BlockSpec((1, C), lambda i, t: (0, 0)),
            ],
            out_specs=pl.BlockSpec((Nb, C, 1), lambda i, t: (i, 0, 0)),
            scratch_shapes=[pltpu.VMEM((Nb, C), jnp.float32)],
        ),
        compiler_params=pltpu.CompilerParams(
            dimension_semantics=("parallel", "arbitrary"),
            vmem_limit_bytes=vmem_limit,
        ),
    )(x2, w1t, b1c, w2t, b2c)

    out = pl.pallas_call(
        _rescale_kernel,
        out_shape=jax.ShapeDtypeStruct((N, C, HW), x.dtype),
        grid_spec=pltpu.PrefetchScalarGridSpec(
            num_scalar_prefetch=0,
            grid=(pl.cdiv(N, Nb), n_hw),
            in_specs=[
                pl.BlockSpec((Nb, C, thw), lambda i, t: (i, 0, t)),
                pl.BlockSpec((Nb, C, 1), lambda i, t: (i, 0, 0)),
            ],
            out_specs=pl.BlockSpec((Nb, C, thw), lambda i, t: (i, 0, t)),
        ),
        compiler_params=pltpu.CompilerParams(
            dimension_semantics=("parallel", "parallel"),
            vmem_limit_bytes=vmem_limit,
        ),
    )(x2, s)
    return out.reshape(N, C, H, W)


def ca_layer_ref(x, w1, b1, w2, b2):
    """Pure-JAX reference (matches the PyTorch forward)."""
    y = jnp.mean(x, axis=(2, 3))                                    # (N, C)
    h = y @ w1.T + b1                                               # (N, Cr)
    h = jnp.where(h >= 0.0, h, 0.2 * h)                             # LeakyReLU(0.2)
    s = jax.nn.sigmoid(h @ w2.T + b2)                               # (N, C)
    return x * s[:, :, None, None]


if __name__ == "__main__":
    key = jax.random.PRNGKey(0)
    kx, k1, k2, k3, k4, kx2 = jax.random.split(key, 6)

    # channel must be a multiple of 8 (PyTorch module uses channel // 8)
    N, C, H, W = 5, 16, 16, 16
    Cr = C // 8
    x = jax.random.normal(kx, (N, C, H, W), dtype=jnp.float32)
    w1 = jax.random.normal(k1, (Cr, C), dtype=jnp.float32) * 0.1
    b1 = jax.random.normal(k2, (Cr,), dtype=jnp.float32) * 0.1
    w2 = jax.random.normal(k3, (C, Cr), dtype=jnp.float32) * 0.1
    b2 = jax.random.normal(k4, (C,), dtype=jnp.float32) * 0.1
    ref = ca_layer_ref(x, w1, b1, w2, b2)

    # 1) fast path, auto batch blocking (grid of 5, lane-dense HW=256).
    out = jax.block_until_ready(ca_layer(x, w1, b1, w2, b2))
    assert out.shape == (N, C, H, W)
    assert jnp.allclose(out, ref, atol=1e-5, rtol=1e-5)

    # 2) fast path with a ragged last batch block (cdiv grid, Nb=2 over N=5).
    out_r = jax.block_until_ready(ca_layer(x, w1, b1, w2, b2, batch_block=2))
    assert jnp.allclose(out_r, ref, atol=1e-5, rtol=1e-5)

    # 3) HW-tiled two-kernel fallback (forced via tiny thresholds), including
    #    a ragged HW tile: HW = 192 -> tiles of 128 + 64(masked).
    N2, C2, H2, W2 = 3, 16, 16, 12
    x2 = jax.random.normal(kx2, (N2, C2, H2, W2), dtype=jnp.float32)
    out2 = jax.block_until_ready(
        ca_layer(x2, w1, b1, w2, b2, block_target_bytes=8192, hw_split_bytes=1))
    ref2 = ca_layer_ref(x2, w1, b1, w2, b2)
    assert jnp.allclose(out2, ref2, atol=1e-5, rtol=1e-5)

    print("KERNEL_OK")
</pallas_src>

<mosaic_0001>
module attributes {stable_mosaic.version = 11 : i64} {
  func.func @_ca_kernel(%arg0: i32, %arg1: memref<1x16x256xf32, #tpu.memory_space<vmem>>, %arg2: memref<16x2xf32, #tpu.memory_space<vmem>>, %arg3: memref<1x2xf32, #tpu.memory_space<vmem>>, %arg4: memref<2x16xf32, #tpu.memory_space<vmem>>, %arg5: memref<1x16xf32, #tpu.memory_space<vmem>>, %arg6: memref<1x16x256xf32, #tpu.memory_space<vmem>>) attributes {dimension_semantics = [#tpu.dimension_semantics<parallel>], iteration_bounds = array<i64: 5>, scalar_prefetch = 0 : i64, scratch_operands = 0 : i64, tpu.core_type = #tpu.core_type<tc>, window_params = [{transform_indices = @transform_0, window_bounds = array<i64: 1, 16, 256>}, {pipeline_mode = #tpu.pipeline_mode<synchronous>, transform_indices = @transform_1, window_bounds = array<i64: 16, 2>}, {pipeline_mode = #tpu.pipeline_mode<synchronous>, transform_indices = @transform_2, window_bounds = array<i64: 1, 2>}, {pipeline_mode = #tpu.pipeline_mode<synchronous>, transform_indices = @transform_3, window_bounds = array<i64: 2, 16>}, {pipeline_mode = #tpu.pipeline_mode<synchronous>, transform_indices = @transform_4, window_bounds = array<i64: 1, 16>}, {transform_indices = @transform_5, window_bounds = array<i64: 1, 16, 256>}]} {
    %c0 = arith.constant 0 : index
    %c0_0 = arith.constant 0 : index
    %c0_1 = arith.constant 0 : index
    %0 = vector.load %arg1[%c0, %c0_0, %c0_1] : memref<1x16x256xf32, #tpu.memory_space<vmem>>, vector<1x16x256xf32>
    %cst = arith.constant dense<0.000000e+00> : vector<1x16xf32>
    %1 = vector.multi_reduction <add>, %0, %cst [2] : vector<1x16x256xf32> to vector<1x16xf32>
    %cst_2 = arith.constant 2.560000e+02 : f32
    %2 = vector.broadcast %cst_2 : f32 to vector<1x16xf32>
    %3 = arith.divf %1, %2 : vector<1x16xf32>
    %c0_3 = arith.constant 0 : index
    %c0_4 = arith.constant 0 : index
    %4 = vector.load %arg2[%c0_3, %c0_4] : memref<16x2xf32, #tpu.memory_space<vmem>>, vector<16x2xf32>
    %cst_5 = arith.constant dense<0.000000e+00> : vector<1x2xf32>
    %5 = tpu.matmul %3, %4, %cst_5 {dimension_numbers = #tpu.dot_dimension_numbers<[1], [0], [0], [1], [0, 0, 1, 1], [], []>} : vector<1x16xf32>, vector<16x2xf32>, vector<1x2xf32> -> vector<1x2xf32>
    %c0_6 = arith.constant 0 : index
    %c0_7 = arith.constant 0 : index
    %6 = vector.load %arg3[%c0_6, %c0_7] : memref<1x2xf32, #tpu.memory_space<vmem>>, vector<1x2xf32>
    %7 = arith.addf %5, %6 : vector<1x2xf32>
    %cst_8 = arith.constant 0.000000e+00 : f32
    %8 = vector.broadcast %cst_8 : f32 to vector<1x2xf32>
    %9 = arith.cmpf oge, %7, %8 : vector<1x2xf32>
    %cst_9 = arith.constant 2.000000e-01 : f32
    %10 = vector.broadcast %cst_9 : f32 to vector<1x2xf32>
    %11 = arith.mulf %10, %7 : vector<1x2xf32>
    %12 = arith.select %9, %7, %11 : vector<1x2xi1>, vector<1x2xf32>
    %c0_10 = arith.constant 0 : index
    %c0_11 = arith.constant 0 : index
    %13 = vector.load %arg4[%c0_10, %c0_11] : memref<2x16xf32, #tpu.memory_space<vmem>>, vector<2x16xf32>
    %cst_12 = arith.constant dense<0.000000e+00> : vector<1x16xf32>
    %14 = tpu.matmul %12, %13, %cst_12 {dimension_numbers = #tpu.dot_dimension_numbers<[1], [0], [0], [1], [0, 0, 1, 1], [], []>} : vector<1x2xf32>, vector<2x16xf32>, vector<1x16xf32> -> vector<1x16xf32>
    %c0_13 = arith.constant 0 : index
    %c0_14 = arith.constant 0 : index
    %15 = vector.load %arg5[%c0_13, %c0_14] : memref<1x16xf32, #tpu.memory_space<vmem>>, vector<1x16xf32>
    %16 = arith.addf %14, %15 : vector<1x16xf32>
    %17 = arith.negf %16 : vector<1x16xf32>
    %18 = math.exp %17 : vector<1x16xf32>
    %cst_15 = arith.constant 1.000000e+00 : f32
    %19 = vector.broadcast %cst_15 : f32 to vector<1x16xf32>
    %20 = arith.addf %19, %18 : vector<1x16xf32>
    %21 = arith.divf %19, %20 : vector<1x16xf32>
    %c0_16 = arith.constant 0 : index
    %c0_17 = arith.constant 0 : index
    %c0_18 = arith.constant 0 : index
    %22 = vector.load %arg1[%c0_16, %c0_17, %c0_18] : memref<1x16x256xf32, #tpu.memory_space<vmem>>, vector<1x16x256xf32>
    %23 = vector.shape_cast %21 : vector<1x16xf32> to vector<1x16x1xf32>
    %24 = vector.broadcast %23 : vector<1x16x1xf32> to vector<1x16x256xf32>
    %25 = arith.mulf %22, %24 : vector<1x16x256xf32>
    %c0_19 = arith.constant 0 : index
    %c0_20 = arith.constant 0 : index
    %c0_21 = arith.constant 0 : index
    %26 = vector.load %arg6[%c0_19, %c0_20, %c0_21] : memref<1x16x256xf32, #tpu.memory_space<vmem>>, vector<1x16x256xf32>
    tpu.vector_store %arg6[%c0_19, %c0_20, %c0_21], %25 {strides = array<i32>} : memref<1x16x256xf32, #tpu.memory_space<vmem>>, vector<1x16x256xf32>,
    return
  }
  func.func @transform_0(%arg0: i32) -> (i32, i32, i32) {
    %c0_i32 = arith.constant 0 : i32
    %c0_i32_0 = arith.constant 0 : i32
    %c0_i32_1 = arith.constant 0 : i32
    return %arg0, %c0_i32, %c0_i32_0 : i32, i32, i32
  }
  func.func @transform_1(%arg0: i32) -> (i32, i32) {
    %c0_i32 = arith.constant 0 : i32
    %c0_i32_0 = arith.constant 0 : i32
    %c0_i32_1 = arith.constant 0 : i32
    return %c0_i32, %c0_i32_0 : i32, i32
  }
  func.func @transform_2(%arg0: i32) -> (i32, i32) {
    %c0_i32 = arith.constant 0 : i32
    %c0_i32_0 = arith.constant 0 : i32
    %c0_i32_1 = arith.constant 0 : i32
    return %c0_i32, %c0_i32_0 : i32, i32
  }
  func.func @transform_3(%arg0: i32) -> (i32, i32) {
    %c0_i32 = arith.constant 0 : i32
    %c0_i32_0 = arith.constant 0 : i32
    %c0_i32_1 = arith.constant 0 : i32
    return %c0_i32, %c0_i32_0 : i32, i32
  }
  func.func @transform_4(%arg0: i32) -> (i32, i32) {
    %c0_i32 = arith.constant 0 : i32
    %c0_i32_0 = arith.constant 0 : i32
    %c0_i32_1 = arith.constant 0 : i32
    return %c0_i32, %c0_i32_0 : i32, i32
  }
  func.func @transform_5(%arg0: i32) -> (i32, i32, i32) {
    %c0_i32 = arith.constant 0 : i32
    %c0_i32_0 = arith.constant 0 : i32
    %c0_i32_1 = arith.constant 0 : i32
    return %arg0, %c0_i32, %c0_i32_0 : i32, i32, i32
  }
}

</mosaic_0001>

<llo_original>
// kernel: tpu_custom_call.1
$region0: #{tpu_custom_call.1}
  #allocation0 [shape = 'u32[]', space=smem, size = 0x4, offset = 0x4, fixed_abs, tag = 'smem constant byte address 0x4 - core index']
  #allocation1 [shape = 'u32[144,128]{1,0:T(1,128)}', space=vmem, size = 0x12000, scoped, tag = 'internal scratch']
  %s0 = inlined_call_operand.hbm [shape: f32[5,16,256], index: 0, kind: input, shape index: {}]
  %s1 = inlined_call_operand.vmem [shape: f32[16,2], index: 1, kind: input, shape index: {}]
  %s2 = inlined_call_operand.vmem [shape: f32[1,2], index: 2, kind: input, shape index: {}]
  %s3 = inlined_call_operand.vmem [shape: f32[2,16], index: 3, kind: input, shape index: {}]
  %s4 = inlined_call_operand.vmem [shape: f32[1,16], index: 4, kind: input, shape index: {}]
  %s5 = inlined_call_operand.hbm [shape: f32[5,16,256], index: 5, kind: output, shape index: {}]
  %s6 = sld [smem:[#allocation0]]
  $region57: #{tpu_custom_call.1} parent=0
    _
  %s8 = ssub.s32 1, %s6
  %s9 = scalar_select 0, %s8, %s6
  $region1: #{tpu_custom_call.1} parent=0
    #allocation2 [shape = 'u8[32768]{0}', space=vmem, size = 0x8000, scoped, tag = 'input window, operand 0']
    #allocation3 [shape = 's32[2]{0}', space=sflag, size = 0x8, scoped, tag = 'scoped memory for tpu_custom_call.1']
    #allocation4 [shape = 's32[2]{0}', space=sflag, size = 0x8, scoped, tag = 'scoped memory for tpu_custom_call.1']
    #allocation5 [shape = 'u8[32768]{0}', space=vmem, size = 0x8000, scoped, tag = 'output window, operand 0']
    %10 = vsyncpa [#allocation3], 0
    %s11 = scalar_lea.sflag [#allocation3], 1
    %12 = vsyncpa %s11, 0
    %13 = vsyncpa [#allocation4], 0
    %s14 = scalar_lea.sflag [#allocation4], 1
    %15 = vsyncpa %s14, 0
    loop: start=0, step=1, limit=7
    $region2: #{tpu_custom_call.1} parent=1 // loop_pre_header
      _
    $region3: #{tpu_custom_call.1} parent=1 // loop_header
      %s17 = sphi 0, %s21
      %p18 = scmp.ge.s32.totalorder %s17, 7
      %s27 = sphi 0, %s29
      %s30 = sphi 0, %s27
      %s31 = sphi 0, %s30
      %s47 = sphi 0, %s31
      %s51 = sphi 0, %s51
      %s53 = sphi 0, %s51
      %s54 = sphi 0, %s53
      %s68 = sphi 0, %s54
      %s72 = sphi 0, %s72
      %s74 = sphi 0, %s72
      %s75 = sphi 0, %s74
      %s89 = sphi 0, %s75
      %s93 = sphi 0, %s93
      %s95 = sphi 0, %s93
      %s96 = sphi 0, %s95
      %s110 = sphi 0, %s96
      %s114 = sphi 0, %s114
      %s116 = sphi 0, %s114
      %s117 = sphi 0, %s116
      %s131 = sphi 0, %s117
      %s137 = sphi 0, %s139
      %s140 = sphi 0, %s137
      %s141 = sphi 0, %s140
      %s157 = sphi 0, %s141
    $region4: #{tpu_custom_call.1} parent=1 // loop_header_branch
      %20 = sbr.rel (%p18) target = $region8
    $region5: #{tpu_custom_call.1} parent=1 // loop_body
      %s22 = ssub.s32 %s17, 1
      %s23 = ssub.s32 %s17, 2
      %s24 = sadd.s32 %s17, 1
      %s25 = ssub.s32 %s17, %s24
      %p26 = scmp.eq.s32.totalorder %s25, 0
      %s28 = sadd.s32 %s27, 1
      %s29 = scalar_select %p26, %s27, %s28
      %p32 = pneg %p26
      %p33 = scmp.eq.s32.totalorder %s17, 4
      %p34 = por %p32, %p33
      %p35 = scmp.ne.s32.totalorder %s27, %s30
      %p36 = scmp.eq.s32.totalorder %s17, 0
      %p37 = por %p35, %p36
      %p38 = scmp.ne.s32.totalorder %s27, %s30
      %p39 = scmp.eq.s32.totalorder %s22, 4
      %p40 = por %p38, %p39
      %p41 = scmp.ne.s32.totalorder %s30, %s31
      %p42 = scmp.eq.s32.totalorder %s22, 0
      %p43 = por %p41, %p42
      %p44 = scmp.ne.s32.totalorder %s30, %s31
      %p45 = scmp.eq.s32.totalorder %s23, 4
      %p46 = por %p44, %p45
      %p48 = scmp.ne.s32.totalorder %s31, %s47
      %p49 = scmp.eq.s32.totalorder %s23, 0
      %p50 = por %p48, %p49
      %s52 = sadd.s32 %s51, 1
      %p55 = scmp.eq.s32.totalorder %s17, 4
      %p56 = scmp.ne.s32.totalorder %s51, %s53
      %p57 = scmp.eq.s32.totalorder %s17, 0
      %p58 = por %p56, %p57
      %p59 = scmp.ne.s32.totalorder %s51, %s53
      %p60 = scmp.eq.s32.totalorder %s22, 4
      %p61 = por %p59, %p60
      %p62 = scmp.ne.s32.totalorder %s53, %s54
      %p63 = scmp.eq.s32.totalorder %s22, 0
      %p64 = por %p62, %p63
      %p65 = scmp.ne.s32.totalorder %s53, %s54
      %p66 = scmp.eq.s32.totalorder %s23, 4
      %p67 = por %p65, %p66
      %p69 = scmp.ne.s32.totalorder %s54, %s68
      %p70 = scmp.eq.s32.totalorder %s23, 0
      %p71 = por %p69, %p70
      %s73 = sadd.s32 %s72, 1
      %p76 = scmp.eq.s32.totalorder %s17, 4
      %p77 = scmp.ne.s32.totalorder %s72, %s74
      %p78 = scmp.eq.s32.totalorder %s17, 0
      %p79 = por %p77, %p78
      %p80 = scmp.ne.s32.totalorder %s72, %s74
      %p81 = scmp.eq.s32.totalorder %s22, 4
      %p82 = por %p80, %p81
      %p83 = scmp.ne.s32.totalorder %s74, %s75
      %p84 = scmp.eq.s32.totalorder %s22, 0
      %p85 = por %p83, %p84
      %p86 = scmp.ne.s32.totalorder %s74, %s75
      %p87 = scmp.eq.s32.totalorder %s23, 4
      %p88 = por %p86, %p87
      %p90 = scmp.ne.s32.totalorder %s75, %s89
      %p91 = scmp.eq.s32.totalorder %s23, 0
      %p92 = por %p90, %p91
      %s94 = sadd.s32 %s93, 1
      %p97 = scmp.eq.s32.totalorder %s17, 4
      %p98 = scmp.ne.s32.totalorder %s93, %s95
      %p99 = scmp.eq.s32.totalorder %s17, 0
      %p100 = por %p98, %p99
      %p101 = scmp.ne.s32.totalorder %s93, %s95
      %p102 = scmp.eq.s32.totalorder %s22, 4
      %p103 = por %p101, %p102
      %p104 = scmp.ne.s32.totalorder %s95, %s96
      %p105 = scmp.eq.s32.totalorder %s22, 0
      %p106 = por %p104, %p105
      %p107 = scmp.ne.s32.totalorder %s95, %s96
      %p108 = scmp.eq.s32.totalorder %s23, 4
      %p109 = por %p107, %p108
      %p111 = scmp.ne.s32.totalorder %s96, %s110
      %p112 = scmp.eq.s32.totalorder %s23, 0
      %p113 = por %p111, %p112
      %s115 = sadd.s32 %s114, 1
      %p118 = scmp.eq.s32.totalorder %s17, 4
      %p119 = scmp.ne.s32.totalorder %s114, %s116
      %p120 = scmp.eq.s32.totalorder %s17, 0
      %p121 = por %p119, %p120
      %p122 = scmp.ne.s32.totalorder %s114, %s116
      %p123 = scmp.eq.s32.totalorder %s22, 4
      %p124 = por %p122, %p123
      %p125 = scmp.ne.s32.totalorder %s116, %s117
      %p126 = scmp.eq.s32.totalorder %s22, 0
      %p127 = por %p125, %p126
      %p128 = scmp.ne.s32.totalorder %s116, %s117
      %p129 = scmp.eq.s32.totalorder %s23, 4
      %p130 = por %p128, %p129
      %p132 = scmp.ne.s32.totalorder %s117, %s131
      %p133 = scmp.eq.s32.totalorder %s23, 0
      %p134 = por %p132, %p133
      %s135 = ssub.s32 %s17, %s24
      %p136 = scmp.eq.s32.totalorder %s135, 0
      %s138 = sadd.s32 %s137, 1
      %s139 = scalar_select %p136, %s137, %s138
      %p142 = pneg %p136
      %p143 = scmp.eq.s32.totalorder %s17, 4
      %p144 = por %p142, %p143
      %p145 = scmp.ne.s32.totalorder %s137, %s140
      %p146 = scmp.eq.s32.totalorder %s17, 0
      %p147 = por %p145, %p146
      %p148 = scmp.ne.s32.totalorder %s137, %s140
      %p149 = scmp.eq.s32.totalorder %s22, 4
      %p150 = por %p148, %p149
      %p151 = scmp.ne.s32.totalorder %s140, %s141
      %p152 = scmp.eq.s32.totalorder %s22, 0
      %p153 = por %p151, %p152
      %p154 = scmp.ne.s32.totalorder %s140, %s141
      %p155 = scmp.eq.s32.totalorder %s23, 4
      %p156 = por %p154, %p155
      %p158 = scmp.ne.s32.totalorder %s141, %s157
      %p159 = scmp.eq.s32.totalorder %s23, 0
      %p160 = por %p158, %p159
      %p161 = scmp.le.s32.totalorder 1, %s17
      %p162 = scmp.lt.s32.totalorder %s17, 6
      %p163 = pnand %p161, %p162
      %p164 = pneg %p163
      // Predicated region
      $region9: #{tpu_custom_call.1} parent=5 // pred_check
        _
      $region10: #{tpu_custom_call.1} parent=5 // pred_check_branch
        %166 = sbr.rel (%p163) target = $region12
      $region11: #{tpu_custom_call.1} parent=5 // pred_region
        %s167 = ssub.s32 %s17, 1
        // Predicated region
        $region13: #{tpu_custom_call.1} parent=11 // pred_check
          %p168 = pneg %p64
        $region14: #{tpu_custom_call.1} parent=11 // pred_check_branch
          %170 = sbr.rel (%p168) target = $region16
        $region15: #{tpu_custom_call.1} parent=11 // pred_region
          _
        $region16: #{tpu_custom_call.1} parent=11 // pred_fallthru
          _
        // Predicated region
        $region17: #{tpu_custom_call.1} parent=11 // pred_check
          %p171 = pneg %p85
        $region18: #{tpu_custom_call.1} parent=11 // pred_check_branch
          %173 = sbr.rel (%p171) target = $region20
        $region19: #{tpu_custom_call.1} parent=11 // pred_region
          _
        $region20: #{tpu_custom_call.1} parent=11 // pred_fallthru
          _
        // Predicated region
        $region21: #{tpu_custom_call.1} parent=11 // pred_check
          %p174 = pneg %p106
        $region22: #{tpu_custom_call.1} parent=11 // pred_check_branch
          %176 = sbr.rel (%p174) target = $region24
        $region23: #{tpu_custom_call.1} parent=11 // pred_region
          _
        $region24: #{tpu_custom_call.1} parent=11 // pred_fallthru
          _
        // Predicated region
        $region25: #{tpu_custom_call.1} parent=11 // pred_check
          %p177 = pneg %p127
        $region26: #{tpu_custom_call.1} parent=11 // pred_check_branch
          %179 = sbr.rel (%p177) target = $region28
        $region27: #{tpu_custom_call.1} parent=11 // pred_region
          _
        $region28: #{tpu_custom_call.1} parent=11 // pred_fallthru
          _
      $region12: #{tpu_custom_call.1} parent=5 // pred_fallthru
        _
      %p180 = scmp.lt.s32.totalorder %s17, 5
      // Predicated region
      $region29: #{tpu_custom_call.1} parent=5 // pred_check
        %p181 = pneg %p180
      $region30: #{tpu_custom_call.1} parent=5 // pred_check_branch
        %183 = sbr.rel (%p181) target = $region32
      $region31: #{tpu_custom_call.1} parent=5 // pred_region
        // Predicated region
        $region33: #{tpu_custom_call.1} parent=31 // pred_check
          %p184 = pneg %p37
        $region34: #{tpu_custom_call.1} parent=31 // pred_check_branch
          %186 = sbr.rel (%p184) target = $region36
        $region35: #{tpu_custom_call.1} parent=31 // pred_region
          %s187 = sand.u32 %s27, 1
          %s188 = scalar_lea.sflag [#allocation3], %s187
          %s189 = sand.u32 %s27, 1
          %s190 = smul.addr %s189, 32
          %s191 = scalar_lea.vmem [#allocation2], %s190
          %s193 = ssub.s32 512, 512
          %194 = vsyncadd %s188, %s193
          %s195 = smul.addr %s17, 4
          %s196 = smul.addr %s195, 128
          %s197 = scalar_lea.hbm %s0, %s196
          %s198 = sshll.u32 %s191, 4
          %s199 = int_to_ptr.vmem [resolvable:$true] %s198
          %204 = dma.hbm_to_vmem [thread:$0]  %s197, 512, %s199, %s188, 256, 256, 16
        $region36: #{tpu_custom_call.1} parent=31 // pred_fallthru
          _
      $region32: #{tpu_custom_call.1} parent=5 // pred_fallthru
        _
      %p205 = scmp.le.s32.totalorder 1, %s17
      %p206 = scmp.lt.s32.totalorder %s17, 6
      %p207 = pnand %p205, %p206
      %p208 = pneg %p207
      // Predicated region
      $region37: #{tpu_custom_call.1} parent=5 // pred_check
        _
      $region38: #{tpu_custom_call.1} parent=5 // pred_check_branch
        %210 = sbr.rel (%p207) target = $region40
      $region39: #{tpu_custom_call.1} parent=5 // pred_region
        %s211 = ssub.s32 %s17, 1
        %s212 = sand.u32 %s30, 1
        %s213 = scalar_lea.sflag [#allocation3], %s212
        %s214 = sand.u32 %s30, 1
        %s215 = smul.addr %s214, 32
        %s216 = scalar_lea.vmem [#allocation2], %s215
        // Predicated region
        $region41: #{tpu_custom_call.1} parent=39 // pred_check
          %p217 = pneg %p43
        $region42: #{tpu_custom_call.1} parent=39 // pred_check_branch
          %219 = sbr.rel (%p217) target = $region44
        $region43: #{tpu_custom_call.1} parent=39 // pred_region
          %220 = dma.done %s213, 512
        $region44: #{tpu_custom_call.1} parent=39 // pred_fallthru
          _
        %s221 = sand.u32 %s30, 1
        %s222 = scalar_lea.sflag [#allocation3], %s221
        %s223 = sand.u32 %s30, 1
        %s224 = smul.addr %s223, 32
        %s225 = scalar_lea.vmem [#allocation2], %s224
        %p226 = pneg %p43
        %p227 = pneg %p40
        %p228 = pneg %p64
        %p229 = pneg %p61
        %p230 = pneg %p85
        %p231 = pneg %p82
        %p232 = pneg %p106
        %p233 = pneg %p103
        %p234 = pneg %p127
        %p235 = pneg %p124
        %p236 = pneg %p153
        %p237 = pneg %p150
        %s238 = sand.u32 %s140, 1
        %s239 = scalar_lea.sflag [#allocation4], %s238
        %s240 = sand.u32 %s140, 1
        %s241 = smul.addr %s240, 32
        %s242 = scalar_lea.vmem [#allocation5], %s241
        %v243 = vld [vmem:[%s216] sm:$0xff]
        %v244 = vld [vmem:[%s216 + $0x8] sm:$0xff]
        %v245 = vld [vmem:[%s216 + $0x10] sm:$0xff]
        %v246 = vld [vmem:[%s216 + $0x18] sm:$0xff]
        %v247 = vadd.f32 %v243, %v244
        %248 = vadd.xlane.f32.xlu0 %v247
        %v249 = vpop.xlane.xlu0 %248
        %v250 = vadd.f32 %v245, %v246
        %251 = vadd.xlane.f32.xlu0 %v250
        %v252 = vpop.xlane.xlu0 %251
        %v253 = vrcp.pop 256.0
        %v254 = vmul.f32 %v249, %v253
        %v255 = vmul.f32 %v252, %v253
        %v256 = vld [vmem:[%s1] sm:$0xff]
        %v257 = vld [vmem:[%s1 + $0x8] sm:$0xff]
        %v258 = vld [vmem:[%s2] sm:$0x1]
        %v261 = vlaneseq
        %v262 = vand.u32 %v261, 127
        %v263 = vlaneseq
        %v264 = vshrl.u32 %v263, 7
        %v265 = vsub.s32 %v262, %v264
        %v266 = vrot.slane %v254, %v265
        %v267 = vadd.s32 %v262, 4294967288
        %v268 = vlaneseq
        %v269 = vshrl.u32 %v268, 7
        %v270 = vsub.s32 %v267, %v269
        %v271 = vrot.slane %v255, %v270
        %vm272 = vcmask 130112
        %v273 = vsel %vm272, %v271, %v266
        %vm274 = vcmask 130048
        %v275 = vsel %vm274, %v273, 0
        %277 = vmatprep.subr.mxu0 0.0
        %278 = vmatpush1.msra.mxu0 0.0
        %279 = vmatprep.subr.mxu0 0.0
        %280 = vmatpush1.msra.mxu0 0.0
        %281 = vmatprep.subr.mxu0 0.0
        %282 = vmatpush1.msra.mxu0 0.0
        %283 = vmatprep.subr.mxu0 0.0
        %284 = vmatpush1.msra.mxu0 0.0
        %285 = vmatprep.subr.mxu0 0.0
        %286 = vmatpush1.msra.mxu0 0.0
        %287 = vmatprep.subr.mxu0 0.0
        %288 = vmatpush1.msra.mxu0 0.0
        %289 = vmatprep.subr.mxu0 0.0
        %290 = vmatpush1.msra.mxu0 0.0
        %291 = vmatprep.subr.mxu0 0.0
        %292 = vmatpush1.msra.mxu0 0.0
        %293 = vmatprep.subr.mxu0 0.0
        %294 = vmatpush1.msra.mxu0 0.0
        %295 = vmatprep.subr.mxu0 0.0
        %296 = vmatpush1.msra.mxu0 0.0
        %297 = vmatprep.subr.mxu0 0.0
        %298 = vmatpush1.msra.mxu0 0.0
        %299 = vmatprep.subr.mxu0 0.0
        %300 = vmatpush1.msra.mxu0 0.0
        %301 = vmatprep.subr.mxu0 0.0
        %302 = vmatpush1.msra.mxu0 0.0
        %303 = vmatprep.subr.mxu0 0.0
        %304 = vmatpush1.msra.mxu0 0.0
        %305 = vmatprep.subr.mxu0 0.0
        %306 = vmatpush1.msra.mxu0 %v257
        %307 = vmatprep.subr.mxu0 0.0
        %308 = vmatpush1.msra.mxu0 %v256
        %309 = vmatprep.subr.mxu0 0.0
        %310 = vmatpush2.msra.mxu0 0.0
        %311 = vmatprep.subr.mxu0 0.0
        %312 = vmatpush2.msra.mxu0 0.0
        %313 = vmatprep.subr.mxu0 0.0
        %314 = vmatpush2.msra.mxu0 0.0
        %315 = vmatprep.subr.mxu0 0.0
        %316 = vmatpush2.msra.mxu0 0.0
        %317 = vmatprep.subr.mxu0 0.0
        %318 = vmatpush2.msra.mxu0 0.0
        %319 = vmatprep.subr.mxu0 0.0
        %320 = vmatpush2.msra.mxu0 0.0
        %321 = vmatprep.subr.mxu0 0.0
        %322 = vmatpush2.msra.mxu0 0.0
        %323 = vmatprep.subr.mxu0 0.0
        %324 = vmatpush2.msra.mxu0 0.0
        %325 = vmatprep.subr.mxu0 0.0
        %326 = vmatpush2.msra.mxu0 0.0
        %327 = vmatprep.subr.mxu0 0.0
        %328 = vmatpush2.msra.mxu0 0.0
        %329 = vmatprep.subr.mxu0 0.0
        %330 = vmatpush2.msra.mxu0 0.0
        %331 = vmatprep.subr.mxu0 0.0
        %332 = vmatpush2.msra.mxu0 0.0
        %333 = vmatprep.subr.mxu0 0.0
        %334 = vmatpush2.msra.mxu0 0.0
        %335 = vmatprep.subr.mxu0 0.0
        %336 = vmatpush2.msra.mxu0 0.0
        %337 = vmatprep.subr.mxu0 0.0
        %338 = vmatpush2.msra.mxu0 0.0
        %339 = vmatprep.subr.mxu0 0.0
        %340 = vmatpush2.msra.mxu0 0.0
        %341 = vmatprep.mubr.f32.mxu0 0.0
        %342 = vmatmul.mubr.f32.gmra.mxu0 %v275
        %v343 = vpop.f32.mrf.mxu0
        %v344 = vadd.f32 %v258, %v343
        %v345 = vpop.f32.mrf.mxu0
        %346 = vdwg.mxu0
        %vm347 = vcmp.ge.f32.partialorder %v344, 0.0
        %v348 = vmul.f32 %v344, 0.2
        %v349 = vsel %vm347, %v344, %v348
        %v350 = vld [vmem:[%s3] sm:$0x3]
        %v351 = vld [vmem:[%s4] sm:$0x1]
        %vm352 = vcmask 15360
        %v354 = vsel %vm352, %v349, 0
        %vm356 = vcmask 1041408
        %v358 = vsel %vm356, %v350, 0
        %360 = vmatprep.subr.mxu0 0.0
        %361 = vmatpush1.msra.mxu0 0.0
        %362 = vmatprep.subr.mxu0 0.0
        %363 = vmatpush1.msra.mxu0 0.0
        %364 = vmatprep.subr.mxu0 0.0
        %365 = vmatpush1.msra.mxu0 0.0
        %366 = vmatprep.subr.mxu0 0.0
        %367 = vmatpush1.msra.mxu0 0.0
        %368 = vmatprep.subr.mxu0 0.0
        %369 = vmatpush1.msra.mxu0 0.0
        %370 = vmatprep.subr.mxu0 0.0
        %371 = vmatpush1.msra.mxu0 0.0
        %372 = vmatprep.subr.mxu0 0.0
        %373 = vmatpush1.msra.mxu0 0.0
        %374 = vmatprep.subr.mxu0 0.0
        %375 = vmatpush1.msra.mxu0 0.0
        %376 = vmatprep.subr.mxu0 0.0
        %377 = vmatpush1.msra.mxu0 0.0
        %378 = vmatprep.subr.mxu0 0.0
        %379 = vmatpush1.msra.mxu0 0.0
        %380 = vmatprep.subr.mxu0 0.0
        %381 = vmatpush1.msra.mxu0 0.0
        %382 = vmatprep.subr.mxu0 0.0
        %383 = vmatpush1.msra.mxu0 0.0
        %384 = vmatprep.subr.mxu0 0.0
        %385 = vmatpush1.msra.mxu0 0.0
        %386 = vmatprep.subr.mxu0 0.0
        %387 = vmatpush1.msra.mxu0 0.0
        %388 = vmatprep.subr.mxu0 0.0
        %389 = vmatpush1.msra.mxu0 0.0
        %390 = vmatprep.subr.mxu0 0.0
        %391 = vmatpush1.msra.mxu0 %v358
        %392 = vmatprep.subr.mxu0 0.0
        %393 = vmatpush2.msra.mxu0 0.0
        %394 = vmatprep.subr.mxu0 0.0
        %395 = vmatpush2.msra.mxu0 0.0
        %396 = vmatprep.subr.mxu0 0.0
        %397 = vmatpush2.msra.mxu0 0.0
        %398 = vmatprep.subr.mxu0 0.0
        %399 = vmatpush2.msra.mxu0 0.0
        %400 = vmatprep.subr.mxu0 0.0
        %401 = vmatpush2.msra.mxu0 0.0
        %402 = vmatprep.subr.mxu0 0.0
        %403 = vmatpush2.msra.mxu0 0.0
        %404 = vmatprep.subr.mxu0 0.0
        %405 = vmatpush2.msra.mxu0 0.0
        %406 = vmatprep.subr.mxu0 0.0
        %407 = vmatpush2.msra.mxu0 0.0
        %408 = vmatprep.subr.mxu0 0.0
        %409 = vmatpush2.msra.mxu0 0.0
        %410 = vmatprep.subr.mxu0 0.0
        %411 = vmatpush2.msra.mxu0 0.0
        %412 = vmatprep.subr.mxu0 0.0
        %413 = vmatpush2.msra.mxu0 0.0
        %414 = vmatprep.subr.mxu0 0.0
        %415 = vmatpush2.msra.mxu0 0.0
        %416 = vmatprep.subr.mxu0 0.0
        %417 = vmatpush2.msra.mxu0 0.0
        %418 = vmatprep.subr.mxu0 0.0
        %419 = vmatpush2.msra.mxu0 0.0
        %420 = vmatprep.subr.mxu0 0.0
        %421 = vmatpush2.msra.mxu0 0.0
        %422 = vmatprep.subr.mxu0 0.0
        %423 = vmatpush2.msra.mxu0 0.0
        %424 = vmatprep.mubr.f32.mxu0 0.0
        %425 = vmatmul.mubr.f32.gmra.mxu0 %v354
        %v426 = vpop.f32.mrf.mxu0
        %v427 = vadd.f32 %v351, %v426
        %v428 = vpop.f32.mrf.mxu0
        %429 = vdwg.mxu0
        %v430 = vxor.u32 %v427, 2147483648
        %v431 = vmul.f32 %v430, 1.442695
        %v432 = vpow.pop %v431
        %v433 = vadd.f32 %v432, 1.0
        %v434 = vrcp.pop %v433
        %v435 = vmul.f32 1.0, %v434
        %v436 = vlaneseq
        %v437 = vshrl.u32 %v436, 7
        %v438 = vsub.s32 0, %v437
        %v439 = vrot.slane %v435, %v438
        %441 = vbcast.lane.b32.xlu0 %v439, 256
        %v442 = vpop.permute.xlu0 %441
        %s444 = sor.u32 256, 8
        %445 = vbcast.lane.b32.xlu0 %v439, %s444
        %v446 = vpop.permute.xlu0 %445
        %v447 = vmul.f32 %v243, %v442
        %v448 = vmul.f32 %v244, %v442
        %v449 = vmul.f32 %v245, %v446
        %v450 = vmul.f32 %v246, %v446
        %451 = vst [vmem:[%s242] sm:$0xff] %v447
        %452 = vst [vmem:[%s242 + $0x8] sm:$0xff] %v448
        %453 = vst [vmem:[%s242 + $0x10] sm:$0xff] %v449
        %454 = vst [vmem:[%s242 + $0x18] sm:$0xff] %v450
        %s455 = sand.u32 %s140, 1
        %s456 = scalar_lea.sflag [#allocation4], %s455
        %s457 = sand.u32 %s140, 1
        %s458 = smul.addr %s457, 32
        %s459 = scalar_lea.vmem [#allocation5], %s458
        // Predicated region
        $region45: #{tpu_custom_call.1} parent=39 // pred_check
          %p460 = pneg %p150
        $region46: #{tpu_custom_call.1} parent=39 // pred_check_branch
          %462 = sbr.rel (%p460) target = $region48
        $region47: #{tpu_custom_call.1} parent=39 // pred_region
          %s464 = ssub.s32 512, 512
          %465 = vsyncadd %s456, %s464
          %s466 = smul.addr %s22, 4
          %s467 = smul.addr %s466, 128
          %s468 = scalar_lea.hbm %s5, %s467
          %s469 = sshll.u32 %s459, 4
          %s470 = int_to_ptr.vmem [resolvable:$true] %s469
          %475 = dma.vmem_to_hbm [thread:$0]  %s470, 512, %s468, %s456, 256, 256, 16
        $region48: #{tpu_custom_call.1} parent=39 // pred_fallthru
          _
      $region40: #{tpu_custom_call.1} parent=5 // pred_fallthru
        _
      %p476 = scmp.le.s32.totalorder 2, %s17
      // Predicated region
      $region49: #{tpu_custom_call.1} parent=5 // pred_check
        %p477 = pneg %p476
      $region50: #{tpu_custom_call.1} parent=5 // pred_check_branch
        %479 = sbr.rel (%p477) target = $region52
      $region51: #{tpu_custom_call.1} parent=5 // pred_region
        %s480 = ssub.s32 %s17, 2
        // Predicated region
        $region53: #{tpu_custom_call.1} parent=51 // pred_check
          %p481 = pneg %p156
        $region54: #{tpu_custom_call.1} parent=51 // pred_check_branch
          %483 = sbr.rel (%p481) target = $region56
        $region55: #{tpu_custom_call.1} parent=51 // pred_region
          %s484 = sand.u32 %s141, 1
          %s485 = scalar_lea.sflag [#allocation4], %s484
          %s486 = sand.u32 %s141, 1
          %s487 = smul.addr %s486, 32
          %s488 = scalar_lea.vmem [#allocation5], %s487
          %489 = dma.done %s485, 512
        $region56: #{tpu_custom_call.1} parent=51 // pred_fallthru
          _
      $region52: #{tpu_custom_call.1} parent=5 // pred_fallthru
        _
    $region6: #{tpu_custom_call.1} parent=1 // loop_footer
      %s21 = sadd.s32 1, %s17
    $region7: #{tpu_custom_call.1} parent=1 // loop_footer_branch
      %16 = sbr.rel target = $region3
    $region8: #{tpu_custom_call.1} parent=1 // loop_exit
      _
    %490 = vsyncpa [#allocation3], 1
    %s491 = scalar_lea.sflag [#allocation3], 1
    %492 = vsyncpa %s491, 1
    %493 = vsyncpa [#allocation4], 1
    %s494 = scalar_lea.sflag [#allocation4], 1
    %495 = vsyncpa %s494, 1

</llo_original>
